<compile_context>
chip_gen: v7x
topology: tpu7x:2x2x1
jax: 0.10.0
libtpu: 0.0.40
codegen_flags: <defaults>
</compile_context>

<pallas_src>
import functools
import random

import jax
import jax.numpy as jnp
import numpy as np
from jax.experimental import pallas as pl
from jax.experimental.pallas import tpu as pltpu

_MAX_INFLIGHT_DMAS = 16  # wave cap for the DMA issue loop


def _tile_gather_kernel(row_off_ref, col_off_ref, img_ref, out_ref, copy_sems,
                        *, g, th, tw, num_sems, channels_last):
    """Batched HBM->HBM tile gather; one grid step handles one image.

    row_off_ref / col_off_ref: (N*g*g,) int32 in SMEM (scalar prefetch);
        precomputed source tile offsets (perm//g*th and perm%g*tw).
    img_ref:  (N, C, H, W) or (N, H, W, C) HBM ref (uncropped input, ANY).
    out_ref:  (N, C, Hc, Wc) or (N, Hc, Wc, C) HBM ref (output, ANY).
    copy_sems: (num_sems,) DMA semaphores, round-robin over in-flight copies.
    """
    n = pl.program_id(0)
    gg = g * g
    base = n * gg
    nslice = pl.ds(n, 1)

    def tile_view(ref, r, c):
        if channels_last:
            return ref.at[nslice, pl.ds(r, th), pl.ds(c, tw), :]
        return ref.at[nslice, :, pl.ds(r, th), pl.ds(c, tw)]

    inflight = [None] * num_sems
    for t in range(gg):                          # static unroll, g*g is small
        j, i = t // g, t % g                     # destination tile (static)
        src_r = row_off_ref[base + t]            # source offsets (dynamic, SMEM)
        src_c = col_off_ref[base + t]
        # Alignment hints on the aligned fast path (static property of th/tw;
        # offsets are always multiples of th / tw).
        if th % 8 == 0:
            src_r = pl.multiple_of(src_r, 8)
        if tw % 128 == 0:
            src_c = pl.multiple_of(src_c, 128)

        slot = t % num_sems
        if inflight[slot] is not None:           # wave cap: recycle sem slot
            inflight[slot].wait()
        cp = pltpu.make_async_copy(
            tile_view(img_ref, src_r, src_c),
            tile_view(out_ref, j * th, i * tw),
            copy_sems.at[slot],
        )
        cp.start()                               # keep transfers in flight
        inflight[slot] = cp

    for cp in inflight:                          # single final wait phase
        if cp is not None:
            cp.wait()


@functools.partial(jax.jit, static_argnames=("grid", "channels_last"))
def random_grid_shuffle(images: jax.Array, perms: jax.Array, *, grid: int,
                        channels_last: bool = False) -> jax.Array:
    """Shuffle grid x grid tiles of a batch of images according to `perms`.

    images: (N, C, H, W) if channels_last=False, else (N, H, W, C).
    perms:  (N, grid*grid) int32; perms[n, t] = source tile index (row-major
            j*grid+i) that lands in destination slot t of image n.
    Output is cropped to a grid multiple (matching the PyTorch module); the
    crop is folded into the kernel (only in-bounds windows are read).
    """
    g = int(grid)
    gg = g * g
    if channels_last:
        N, H, W, C = images.shape
        out_shape = None  # filled below
    else:
        N, C, H, W = images.shape
    th, tw = H // g, W // g
    Hc, Wc = th * g, tw * g
    out_shape = (N, Hc, Wc, C) if channels_last else (N, C, Hc, Wc)

    perms = jnp.clip(jnp.asarray(perms, jnp.int32).reshape(N, gg), 0, gg - 1)
    # Hoist the per-tile div/mod off the in-kernel scalar critical path.
    row_off = (perms // g * th).reshape(-1)      # (N*gg,) int32
    col_off = (perms % g * tw).reshape(-1)       # (N*gg,) int32

    num_sems = min(gg, _MAX_INFLIGHT_DMAS)
    kernel = functools.partial(_tile_gather_kernel, g=g, th=th, tw=tw,
                               num_sems=num_sems, channels_last=channels_last)

    return pl.pallas_call(
        kernel,
        out_shape=jax.ShapeDtypeStruct(out_shape, images.dtype),
        grid_spec=pltpu.PrefetchScalarGridSpec(
            num_scalar_prefetch=2,
            grid=(N,),  # one grid step per image
            in_specs=[pl.BlockSpec(memory_space=pl.ANY)],   # raw HBM, manual DMA
            out_specs=pl.BlockSpec(memory_space=pl.ANY),    # raw HBM, manual DMA
            scratch_shapes=[pltpu.SemaphoreType.DMA((num_sems,))],
        ),
        compiler_params=pltpu.CompilerParams(
            dimension_semantics=("parallel",)),  # shard batch across v7x's 2 TCs
    )(row_off, col_off, images)


class RandomGrid:
    """JAX/Pallas port of torchsweetie RandomGrid (array images, no PIL).

    The coin flip and permutation use a host-side Python RNG (exactly like
    the original's random.random / random.shuffle), so there is no
    device->host sync; only tiny int32 permutation arrays are shipped.
    """

    def __init__(self, grid: int, prob: float, seed=None,
                 channels_last: bool = False) -> None:
        assert grid >= 2
        assert 0.0 <= prob <= 1.0
        self.grid = grid
        self.prob = prob
        self.channels_last = channels_last
        self._rng = random.Random(seed)

    def _perm(self):
        p = list(range(self.grid * self.grid))
        self._rng.shuffle(p)
        return p

    def __call__(self, image: jax.Array) -> jax.Array:
        """Single image (CHW or HWC); mirrors the PyTorch module semantics
        (a skipped image is returned uncropped and unchanged)."""
        if self._rng.random() > self.prob:
            return image
        perm = np.asarray(self._perm(), np.int32)[None]
        out = random_grid_shuffle(image[None], perm, grid=self.grid,
                                  channels_last=self.channels_last)
        return out[0]

    def apply_batch(self, images: jax.Array) -> jax.Array:
        """Batched variant: one host perm batch, one H2D copy, one dispatch.

        Images that lose the coin flip get the identity permutation; note
        they are still cropped to a grid multiple so the batch output shape
        is uniform (slight deviation from the per-image PyTorch module).
        """
        N = images.shape[0]
        gg = self.grid * self.grid
        perms = np.tile(np.arange(gg, dtype=np.int32), (N, 1))
        for b in range(N):
            if self._rng.random() <= self.prob:
                perms[b] = self._perm()
        return random_grid_shuffle(images, perms, grid=self.grid,
                                   channels_last=self.channels_last)


def _reference(images_np: np.ndarray, perms_np: np.ndarray, grid: int,
               channels_last: bool = False) -> np.ndarray:
    if channels_last:
        images_np = np.transpose(images_np, (0, 3, 1, 2))
    N, C, H, W = images_np.shape
    g = grid
    th, tw = H // g, W // g
    out = np.zeros((N, C, th * g, tw * g), dtype=images_np.dtype)
    for n in range(N):
        for t in range(g * g):
            j, i = t // g, t % g
            s = int(perms_np[n, t])
            sj, si = s // g, s % g
            out[n, :, j * th:(j + 1) * th, i * tw:(i + 1) * tw] = \
                images_np[n, :, sj * th:(sj + 1) * th, si * tw:(si + 1) * tw]
    if channels_last:
        out = np.transpose(out, (0, 2, 3, 1))
    return out


if __name__ == "__main__":
    key = jax.random.PRNGKey(0)
    k_img, k_perm, k_u8 = jax.random.split(key, 3)

    def rand_perms(k, n, g):
        ks = jax.random.split(k, n)
        return np.stack(
            [np.asarray(jax.random.permutation(kk, g * g)) for kk in ks]
        ).astype(np.int32)

    # 1) batched, aligned tiles (8 x 128), f32, CHW
    N, C, H, W, g = 2, 3, 16, 256, 2
    x = jax.random.normal(k_img, (N, C, H, W), dtype=jnp.float32)
    perms = rand_perms(k_perm, N, g)
    out = jax.block_until_ready(random_grid_shuffle(x, perms, grid=g))
    np.testing.assert_array_equal(np.asarray(out), _reference(np.asarray(x), perms, g))

    # 2) batched, odd tile sizes + in-kernel crop (tiles 7x85, output 21x255)
    N, C, H, W, g = 2, 3, 22, 257, 3
    x = jax.random.normal(k_img, (N, C, H, W), dtype=jnp.float32)
    perms = rand_perms(k_perm, N, g)
    out = jax.block_until_ready(random_grid_shuffle(x, perms, grid=g))
    np.testing.assert_array_equal(np.asarray(out), _reference(np.asarray(x), perms, g))

    # 3) uint8, channels-last (HWC) fast path: innermost HBM run = tw*C bytes
    N, H, W, C, g = 2, 16, 256, 3, 2
    xu8 = jax.random.randint(k_u8, (N, H, W, C), 0, 256, dtype=jnp.int32).astype(jnp.uint8)
    perms = rand_perms(k_perm, N, g)
    out = jax.block_until_ready(
        random_grid_shuffle(xu8, perms, grid=g, channels_last=True))
    np.testing.assert_array_equal(
        np.asarray(out), _reference(np.asarray(xu8), perms, g, channels_last=True))

    # 4) large grid exercising the in-flight-DMA wave cap (g*g = 36 > 16)
    N, C, H, W, g = 1, 3, 36, 144, 6
    x = jax.random.normal(k_img, (N, C, H, W), dtype=jnp.float32)
    perms = rand_perms(k_perm, N, g)
    out = jax.block_until_ready(random_grid_shuffle(x, perms, grid=g))
    np.testing.assert_array_equal(np.asarray(out), _reference(np.asarray(x), perms, g))

    # 5) module path: single-image call + batched call with the host RNG
    module = RandomGrid(grid=2, prob=1.0, seed=0)
    x1 = jax.random.normal(k_img, (3, 16, 256), dtype=jnp.float32)
    out1 = jax.block_until_ready(module(x1))
    rng = random.Random(0)
    _ = rng.random()                       # coin flip consumed by __call__
    exp = list(range(4)); rng.shuffle(exp)
    ref1 = _reference(np.asarray(x1)[None], np.asarray([exp], np.int32), 2)[0]
    np.testing.assert_array_equal(np.asarray(out1), ref1)

    batch_module = RandomGrid(grid=2, prob=1.0, seed=1)
    xb = jax.random.normal(k_img, (2, 3, 16, 256), dtype=jnp.float32)
    outb = jax.block_until_ready(batch_module.apply_batch(xb))
    rng = random.Random(1)
    exp_perms = []
    for _b in range(2):
        _ = rng.random()
        p = list(range(4)); rng.shuffle(p)
        exp_perms.append(p)
    refb = _reference(np.asarray(xb), np.asarray(exp_perms, np.int32), 2)
    np.testing.assert_array_equal(np.asarray(outb), refb)

    print("KERNEL_OK")
</pallas_src>

<mosaic_0001>
module attributes {stable_mosaic.version = 11 : i64} {
  func.func @_tile_gather_kernel(%arg0: i32, %arg1: memref<8xi32, #tpu.memory_space<smem>>, %arg2: memref<8xi32, #tpu.memory_space<smem>>, %arg3: memref<2x3x16x256xf32, #tpu.memory_space<any>>, %arg4: memref<2x3x16x256xf32, #tpu.memory_space<any>>, %arg5: memref<4x!tpu.dma_semaphore, #tpu.memory_space<semaphore_mem>>) attributes {dimension_semantics = [#tpu.dimension_semantics<parallel>], iteration_bounds = array<i64: 2>, scalar_prefetch = 2 : i64, scratch_operands = 1 : i64, tpu.core_type = #tpu.core_type<tc>, window_params = [{}, {}]} {
    %c4_i32 = arith.constant 4 : i32
    %0 = arith.muli %arg0, %c4_i32 : i32
    %c0_i32 = arith.constant 0 : i32
    %1 = arith.addi %0, %c0_i32 : i32
    %2 = arith.index_cast %1 : i32 to index
    %3 = memref.load %arg1[%2] : memref<8xi32, #tpu.memory_space<smem>>
    %c0_i32_0 = arith.constant 0 : i32
    %4 = arith.addi %0, %c0_i32_0 : i32
    %5 = arith.index_cast %4 : i32 to index
    %6 = memref.load %arg2[%5] : memref<8xi32, #tpu.memory_space<smem>>
    %7 = tpu.assume_multiple %3, 8 : i32
    %8 = tpu.assume_multiple %6, 128 : i32
    %c0_i32_1 = arith.constant 0 : i32
    %c0_i32_2 = arith.constant 0 : i32
    %9 = tpu.memref_slice %arg3[%arg0, %c0_i32_2, %7, %8] : memref<2x3x16x256xf32, #tpu.memory_space<any>> -> memref<1x3x8x128xf32, #tpu.memory_space<any>>
    %c0_i32_3 = arith.constant 0 : i32
    %c0_i32_4 = arith.constant 0 : i32
    %c0_i32_5 = arith.constant 0 : i32
    %10 = tpu.memref_slice %arg4[%arg0, %c0_i32_3, %c0_i32_4, %c0_i32_5] : memref<2x3x16x256xf32, #tpu.memory_space<any>> -> memref<1x3x8x128xf32, #tpu.memory_space<any>>
    %11 = tpu.memref_slice %arg5[%c0_i32_1] : memref<4x!tpu.dma_semaphore, #tpu.memory_space<semaphore_mem>> -> memref<1x!tpu.dma_semaphore, #tpu.memory_space<semaphore_mem>>
    %12 = tpu.memref_squeeze %11 : memref<1x!tpu.dma_semaphore, #tpu.memory_space<semaphore_mem>> -> memref<!tpu.dma_semaphore, #tpu.memory_space<semaphore_mem>>
    tpu.enqueue_dma source(%9 : memref<1x3x8x128xf32, #tpu.memory_space<any>>) target(%10 : memref<1x3x8x128xf32, #tpu.memory_space<any>>) target_semaphore(%12 : memref<!tpu.dma_semaphore, #tpu.memory_space<semaphore_mem>>)
    %c1_i32 = arith.constant 1 : i32
    %13 = arith.addi %0, %c1_i32 : i32
    %14 = arith.index_cast %13 : i32 to index
    %15 = memref.load %arg1[%14] : memref<8xi32, #tpu.memory_space<smem>>
    %c1_i32_6 = arith.constant 1 : i32
    %16 = arith.addi %0, %c1_i32_6 : i32
    %17 = arith.index_cast %16 : i32 to index
    %18 = memref.load %arg2[%17] : memref<8xi32, #tpu.memory_space<smem>>
    %19 = tpu.assume_multiple %15, 8 : i32
    %20 = tpu.assume_multiple %18, 128 : i32
    %c1_i32_7 = arith.constant 1 : i32
    %c0_i32_8 = arith.constant 0 : i32
    %21 = tpu.memref_slice %arg3[%arg0, %c0_i32_8, %19, %20] : memref<2x3x16x256xf32, #tpu.memory_space<any>> -> memref<1x3x8x128xf32, #tpu.memory_space<any>>
    %c0_i32_9 = arith.constant 0 : i32
    %c0_i32_10 = arith.constant 0 : i32
    %c128_i32 = arith.constant 128 : i32
    %22 = tpu.memref_slice %arg4[%arg0, %c0_i32_9, %c0_i32_10, %c128_i32] : memref<2x3x16x256xf32, #tpu.memory_space<any>> -> memref<1x3x8x128xf32, #tpu.memory_space<any>>
    %23 = tpu.memref_slice %arg5[%c1_i32_7] : memref<4x!tpu.dma_semaphore, #tpu.memory_space<semaphore_mem>> -> memref<1x!tpu.dma_semaphore, #tpu.memory_space<semaphore_mem>>
    %24 = tpu.memref_squeeze %23 : memref<1x!tpu.dma_semaphore, #tpu.memory_space<semaphore_mem>> -> memref<!tpu.dma_semaphore, #tpu.memory_space<semaphore_mem>>
    tpu.enqueue_dma source(%21 : memref<1x3x8x128xf32, #tpu.memory_space<any>>) target(%22 : memref<1x3x8x128xf32, #tpu.memory_space<any>>) target_semaphore(%24 : memref<!tpu.dma_semaphore, #tpu.memory_space<semaphore_mem>>)
    %c2_i32 = arith.constant 2 : i32
    %25 = arith.addi %0, %c2_i32 : i32
    %26 = arith.index_cast %25 : i32 to index
    %27 = memref.load %arg1[%26] : memref<8xi32, #tpu.memory_space<smem>>
    %c2_i32_11 = arith.constant 2 : i32
    %28 = arith.addi %0, %c2_i32_11 : i32
    %29 = arith.index_cast %28 : i32 to index
    %30 = memref.load %arg2[%29] : memref<8xi32, #tpu.memory_space<smem>>
    %31 = tpu.assume_multiple %27, 8 : i32
    %32 = tpu.assume_multiple %30, 128 : i32
    %c2_i32_12 = arith.constant 2 : i32
    %c0_i32_13 = arith.constant 0 : i32
    %33 = tpu.memref_slice %arg3[%arg0, %c0_i32_13, %31, %32] : memref<2x3x16x256xf32, #tpu.memory_space<any>> -> memref<1x3x8x128xf32, #tpu.memory_space<any>>
    %c0_i32_14 = arith.constant 0 : i32
    %c8_i32 = arith.constant 8 : i32
    %c0_i32_15 = arith.constant 0 : i32
    %34 = tpu.memref_slice %arg4[%arg0, %c0_i32_14, %c8_i32, %c0_i32_15] : memref<2x3x16x256xf32, #tpu.memory_space<any>> -> memref<1x3x8x128xf32, #tpu.memory_space<any>>
    %35 = tpu.memref_slice %arg5[%c2_i32_12] : memref<4x!tpu.dma_semaphore, #tpu.memory_space<semaphore_mem>> -> memref<1x!tpu.dma_semaphore, #tpu.memory_space<semaphore_mem>>
    %36 = tpu.memref_squeeze %35 : memref<1x!tpu.dma_semaphore, #tpu.memory_space<semaphore_mem>> -> memref<!tpu.dma_semaphore, #tpu.memory_space<semaphore_mem>>
    tpu.enqueue_dma source(%33 : memref<1x3x8x128xf32, #tpu.memory_space<any>>) target(%34 : memref<1x3x8x128xf32, #tpu.memory_space<any>>) target_semaphore(%36 : memref<!tpu.dma_semaphore, #tpu.memory_space<semaphore_mem>>)
    %c3_i32 = arith.constant 3 : i32
    %37 = arith.addi %0, %c3_i32 : i32
    %38 = arith.index_cast %37 : i32 to index
    %39 = memref.load %arg1[%38] : memref<8xi32, #tpu.memory_space<smem>>
    %c3_i32_16 = arith.constant 3 : i32
    %40 = arith.addi %0, %c3_i32_16 : i32
    %41 = arith.index_cast %40 : i32 to index
    %42 = memref.load %arg2[%41] : memref<8xi32, #tpu.memory_space<smem>>
    %43 = tpu.assume_multiple %39, 8 : i32
    %44 = tpu.assume_multiple %42, 128 : i32
    %c3_i32_17 = arith.constant 3 : i32
    %c0_i32_18 = arith.constant 0 : i32
    %45 = tpu.memref_slice %arg3[%arg0, %c0_i32_18, %43, %44] : memref<2x3x16x256xf32, #tpu.memory_space<any>> -> memref<1x3x8x128xf32, #tpu.memory_space<any>>
    %c0_i32_19 = arith.constant 0 : i32
    %c8_i32_20 = arith.constant 8 : i32
    %c128_i32_21 = arith.constant 128 : i32
    %46 = tpu.memref_slice %arg4[%arg0, %c0_i32_19, %c8_i32_20, %c128_i32_21] : memref<2x3x16x256xf32, #tpu.memory_space<any>> -> memref<1x3x8x128xf32, #tpu.memory_space<any>>
    %47 = tpu.memref_slice %arg5[%c3_i32_17] : memref<4x!tpu.dma_semaphore, #tpu.memory_space<semaphore_mem>> -> memref<1x!tpu.dma_semaphore, #tpu.memory_space<semaphore_mem>>
    %48 = tpu.memref_squeeze %47 : memref<1x!tpu.dma_semaphore, #tpu.memory_space<semaphore_mem>> -> memref<!tpu.dma_semaphore, #tpu.memory_space<semaphore_mem>>
    tpu.enqueue_dma source(%45 : memref<1x3x8x128xf32, #tpu.memory_space<any>>) target(%46 : memref<1x3x8x128xf32, #tpu.memory_space<any>>) target_semaphore(%48 : memref<!tpu.dma_semaphore, #tpu.memory_space<semaphore_mem>>)
    %c0_i32_22 = arith.constant 0 : i32
    %c0_i32_23 = arith.constant 0 : i32
    %49 = tpu.memref_slice %arg3[%arg0, %c0_i32_23, %7, %8] : memref<2x3x16x256xf32, #tpu.memory_space<any>> -> memref<1x3x8x128xf32, #tpu.memory_space<any>>
    %c0_i32_24 = arith.constant 0 : i32
    %c0_i32_25 = arith.constant 0 : i32
    %c0_i32_26 = arith.constant 0 : i32
    %50 = tpu.memref_slice %arg4[%arg0, %c0_i32_24, %c0_i32_25, %c0_i32_26] : memref<2x3x16x256xf32, #tpu.memory_space<any>> -> memref<1x3x8x128xf32, #tpu.memory_space<any>>
    %51 = tpu.memref_slice %arg5[%c0_i32_22] : memref<4x!tpu.dma_semaphore, #tpu.memory_space<semaphore_mem>> -> memref<1x!tpu.dma_semaphore, #tpu.memory_space<semaphore_mem>>
    %52 = tpu.memref_squeeze %51 : memref<1x!tpu.dma_semaphore, #tpu.memory_space<semaphore_mem>> -> memref<!tpu.dma_semaphore, #tpu.memory_space<semaphore_mem>>
    tpu.wait_dma2 semaphore(%52 : memref<!tpu.dma_semaphore, #tpu.memory_space<semaphore_mem>>) src(%49 : memref<1x3x8x128xf32, #tpu.memory_space<any>>) dst(%50 : memref<1x3x8x128xf32, #tpu.memory_space<any>>)
    %c1_i32_27 = arith.constant 1 : i32
    %c0_i32_28 = arith.constant 0 : i32
    %53 = tpu.memref_slice %arg3[%arg0, %c0_i32_28, %19, %20] : memref<2x3x16x256xf32, #tpu.memory_space<any>> -> memref<1x3x8x128xf32, #tpu.memory_space<any>>
    %c0_i32_29 = arith.constant 0 : i32
    %c0_i32_30 = arith.constant 0 : i32
    %c128_i32_31 = arith.constant 128 : i32
    %54 = tpu.memref_slice %arg4[%arg0, %c0_i32_29, %c0_i32_30, %c128_i32_31] : memref<2x3x16x256xf32, #tpu.memory_space<any>> -> memref<1x3x8x128xf32, #tpu.memory_space<any>>
    %55 = tpu.memref_slice %arg5[%c1_i32_27] : memref<4x!tpu.dma_semaphore, #tpu.memory_space<semaphore_mem>> -> memref<1x!tpu.dma_semaphore, #tpu.memory_space<semaphore_mem>>
    %56 = tpu.memref_squeeze %55 : memref<1x!tpu.dma_semaphore, #tpu.memory_space<semaphore_mem>> -> memref<!tpu.dma_semaphore, #tpu.memory_space<semaphore_mem>>
    tpu.wait_dma2 semaphore(%56 : memref<!tpu.dma_semaphore, #tpu.memory_space<semaphore_mem>>) src(%53 : memref<1x3x8x128xf32, #tpu.memory_space<any>>) dst(%54 : memref<1x3x8x128xf32, #tpu.memory_space<any>>)
    %c2_i32_32 = arith.constant 2 : i32
    %c0_i32_33 = arith.constant 0 : i32
    %57 = tpu.memref_slice %arg3[%arg0, %c0_i32_33, %31, %32] : memref<2x3x16x256xf32, #tpu.memory_space<any>> -> memref<1x3x8x128xf32, #tpu.memory_space<any>>
    %c0_i32_34 = arith.constant 0 : i32
    %c8_i32_35 = arith.constant 8 : i32
    %c0_i32_36 = arith.constant 0 : i32
    %58 = tpu.memref_slice %arg4[%arg0, %c0_i32_34, %c8_i32_35, %c0_i32_36] : memref<2x3x16x256xf32, #tpu.memory_space<any>> -> memref<1x3x8x128xf32, #tpu.memory_space<any>>
    %59 = tpu.memref_slice %arg5[%c2_i32_32] : memref<4x!tpu.dma_semaphore, #tpu.memory_space<semaphore_mem>> -> memref<1x!tpu.dma_semaphore, #tpu.memory_space<semaphore_mem>>
    %60 = tpu.memref_squeeze %59 : memref<1x!tpu.dma_semaphore, #tpu.memory_space<semaphore_mem>> -> memref<!tpu.dma_semaphore, #tpu.memory_space<semaphore_mem>>
    tpu.wait_dma2 semaphore(%60 : memref<!tpu.dma_semaphore, #tpu.memory_space<semaphore_mem>>) src(%57 : memref<1x3x8x128xf32, #tpu.memory_space<any>>) dst(%58 : memref<1x3x8x128xf32, #tpu.memory_space<any>>)
    %c3_i32_37 = arith.constant 3 : i32
    %c0_i32_38 = arith.constant 0 : i32
    %61 = tpu.memref_slice %arg3[%arg0, %c0_i32_38, %43, %44] : memref<2x3x16x256xf32, #tpu.memory_space<any>> -> memref<1x3x8x128xf32, #tpu.memory_space<any>>
    %c0_i32_39 = arith.constant 0 : i32
    %c8_i32_40 = arith.constant 8 : i32
    %c128_i32_41 = arith.constant 128 : i32
    %62 = tpu.memref_slice %arg4[%arg0, %c0_i32_39, %c8_i32_40, %c128_i32_41] : memref<2x3x16x256xf32, #tpu.memory_space<any>> -> memref<1x3x8x128xf32, #tpu.memory_space<any>>
    %63 = tpu.memref_slice %arg5[%c3_i32_37] : memref<4x!tpu.dma_semaphore, #tpu.memory_space<semaphore_mem>> -> memref<1x!tpu.dma_semaphore, #tpu.memory_space<semaphore_mem>>
    %64 = tpu.memref_squeeze %63 : memref<1x!tpu.dma_semaphore, #tpu.memory_space<semaphore_mem>> -> memref<!tpu.dma_semaphore, #tpu.memory_space<semaphore_mem>>
    tpu.wait_dma2 semaphore(%64 : memref<!tpu.dma_semaphore, #tpu.memory_space<semaphore_mem>>) src(%61 : memref<1x3x8x128xf32, #tpu.memory_space<any>>) dst(%62 : memref<1x3x8x128xf32, #tpu.memory_space<any>>)
    return
  }
}

</mosaic_0001>

<llo_original>
// kernel: random_grid_shuffle.1
$region0: #{random_grid_shuffle.1}
  #allocation0 [shape = 'u32[]', space=smem, size = 0x4, offset = 0x4, fixed_abs, tag = 'smem constant byte address 0x4 - core index']
  #allocation1 [shape = 'u32[144,128]{1,0:T(1,128)}', space=vmem, size = 0x12000, scoped, tag = 'internal scratch']
  #allocation2 [shape = 's32[4]{0}', space=sflag, size = 0x10, scoped, tag = 'scratch operand']
  #allocation3 [shape = 's32[1]{0}', space=sflag, size = 0x4, scoped, tag = 'scoped memory for random_grid_shuffle.1']
  #allocation4 [shape = 'u8[512]{0}', space=smem, size = 0x200, scoped, tag = 'prefetched SMEM operand 0']
  #allocation5 [shape = 'u8[512]{0}', space=smem, size = 0x200, scoped, tag = 'prefetched SMEM operand 1']
  #allocation6 [shape = 's32[]', space=sflag, size = 0x4, offset = 0, fixed_abs, tag = 'sflag constant byte address 0x0 - dummy sync flag']
  #allocation8 [shape = 's32[]', space=sflag, size = 0x4, offset = 0, fixed_abs, tag = 'sflag constant byte address 0x0 - dummy sync flag']
  #allocation10 [shape = 's32[]', space=sflag, size = 0x4, offset = 0, fixed_abs, tag = 'sflag constant byte address 0x0 - dummy sync flag']
  #allocation12 [shape = 's32[]', space=sflag, size = 0x4, offset = 0, fixed_abs, tag = 'sflag constant byte address 0x0 - dummy sync flag']
  %s0 = inlined_call_operand.vmem [shape: s32[8], index: 0, kind: input, shape index: {}]
  %s1 = inlined_call_operand.vmem [shape: s32[8], index: 1, kind: input, shape index: {}]
  %s2 = inlined_call_operand.hbm [shape: f32[2,3,16,256], index: 2, kind: input, shape index: {}]
  %s3 = inlined_call_operand.hbm [shape: f32[2,3,16,256], index: 3, kind: output, shape index: {}]
  %s4 = sld [smem:[#allocation0]]
  $region9: #{random_grid_shuffle.1} parent=0
    _
  %s6 = ssub.s32 1, %s4
  %s7 = scalar_select 0, %s6, %s4
  %s8 = sshll.u32 %s0, 4
  %s9 = int_to_ptr.vmem [resolvable:$true] %s8
  %11 = dma.vmem_to_smem %s9, 16, [#allocation4], [#allocation3]
  %s12 = sshll.u32 %s1, 4
  %s13 = int_to_ptr.vmem [resolvable:$true] %s12
  %15 = dma.vmem_to_smem %s13, 16, [#allocation5], [#allocation3]
  %16 = dma.done [#allocation3], 32
  %17 = sfence
  loop: start=0, step=1, limit=2
  $region2: #{random_grid_shuffle.1} parent=0 // loop_pre_header
    _
  $region3: #{random_grid_shuffle.1} parent=0 // loop_header
    %s19 = sphi 0, %s23
    %p20 = scmp.ge.s32.totalorder %s19, 2
  $region4: #{random_grid_shuffle.1} parent=0 // loop_header_branch
    %22 = sbr.rel (%p20) target = $region8
  $region5: #{random_grid_shuffle.1} parent=0 // loop_body
    #allocation7 [shape = 'u32[3]{0}', space=smem, size = 0xc, scoped, tag = 'DMA stride descriptor']
    #allocation9 [shape = 'u32[3]{0}', space=smem, size = 0xc, scoped, tag = 'DMA stride descriptor']
    #allocation11 [shape = 'u32[3]{0}', space=smem, size = 0xc, scoped, tag = 'DMA stride descriptor']
    #allocation13 [shape = 'u32[3]{0}', space=smem, size = 0xc, scoped, tag = 'DMA stride descriptor']
    %s24 = sadd.s32 %s19, 1
    %s25 = smul.u32 %s19, 4
    %s26 = sld [smem:[#allocation4 + %s25]]
    %s27 = sld [smem:[#allocation5 + %s25]]
    %s28 = sshra.s32 %s27, 7
    %s29 = sand.u32 %s27, 127
    %s30 = sshra.s32 %s26, 3
    %s31 = sand.u32 %s26, 7
    %s32 = smul.u32 %s30, 2
    %s33 = sadd.s32 %s28, %s32
    %s34 = smul.u32 %s19, 12
    %s35 = sadd.s32 %s33, %s34
    %s36 = smul.addr %s35, 128
    %s37 = scalar_lea.hbm %s2, %s36
    %s38 = smul.addr %s34, 128
    %s39 = scalar_lea.hbm %s3, %s38
    %s41 = sshll.u32 1, 14
    %s42 = sxor.u32 4294967295, %s41
    %s45 = sshll.u32 3, 24
    %s46 = sxor.u32 4294967295, %s45
    %s47 = sand.u32 0, %s46
    %s49 = sor.u32 %s47, 0
    %52 = sst [smem:[#allocation7]] 512
    %s53 = scalar_lea.smem [#allocation7], 1
    %54 = sst [smem:[%s53]] 512
    %s55 = scalar_lea.smem [#allocation7], 2
    %56 = sst [smem:[%s55]] 8
    %58 = dma.general %s37, 384, %s39, [#allocation2], [#allocation6], [#allocation7], %s49, 0
    %s59 = sadd.s32 %s25, 1
    %s60 = sld [smem:[#allocation4 + %s59]]
    %s61 = sld [smem:[#allocation5 + %s59]]
    %s62 = sshra.s32 %s61, 7
    %s63 = sand.u32 %s61, 127
    %s64 = sshra.s32 %s60, 3
    %s65 = sand.u32 %s60, 7
    %s66 = smul.u32 %s64, 2
    %s67 = sadd.s32 %s62, %s66
    %s68 = sadd.s32 %s67, %s34
    %s69 = smul.addr %s68, 128
    %s70 = scalar_lea.hbm %s2, %s69
    %s71 = sadd.s32 1, %s34
    %s72 = smul.addr %s71, 128
    %s73 = scalar_lea.hbm %s3, %s72
    %s74 = scalar_lea.sflag [#allocation2], 1
    %s76 = sshll.u32 1, 14
    %s77 = sxor.u32 4294967295, %s76
    %s80 = sshll.u32 3, 24
    %s81 = sxor.u32 4294967295, %s80
    %s82 = sand.u32 0, %s81
    %s84 = sor.u32 %s82, 0
    %87 = sst [smem:[#allocation9]] 512
    %s88 = scalar_lea.smem [#allocation9], 1
    %89 = sst [smem:[%s88]] 512
    %s90 = scalar_lea.smem [#allocation9], 2
    %91 = sst [smem:[%s90]] 8
    %93 = dma.general %s70, 384, %s73, %s74, [#allocation8], [#allocation9], %s84, 0
    %s94 = sadd.s32 %s25, 2
    %s95 = sld [smem:[#allocation4 + %s94]]
    %s96 = sld [smem:[#allocation5 + %s94]]
    %s97 = sshra.s32 %s96, 7
    %s98 = sand.u32 %s96, 127
    %s99 = sshra.s32 %s95, 3
    %s100 = sand.u32 %s95, 7
    %s101 = smul.u32 %s99, 2
    %s102 = sadd.s32 %s97, %s101
    %s103 = sadd.s32 %s102, %s34
    %s104 = smul.addr %s103, 128
    %s105 = scalar_lea.hbm %s2, %s104
    %s106 = sadd.s32 2, %s34
    %s107 = smul.addr %s106, 128
    %s108 = scalar_lea.hbm %s3, %s107
    %s109 = scalar_lea.sflag [#allocation2], 2
    %s111 = sshll.u32 1, 14
    %s112 = sxor.u32 4294967295, %s111
    %s115 = sshll.u32 3, 24
    %s116 = sxor.u32 4294967295, %s115
    %s117 = sand.u32 0, %s116
    %s119 = sor.u32 %s117, 0
    %122 = sst [smem:[#allocation11]] 512
    %s123 = scalar_lea.smem [#allocation11], 1
    %124 = sst [smem:[%s123]] 512
    %s125 = scalar_lea.smem [#allocation11], 2
    %126 = sst [smem:[%s125]] 8
    %128 = dma.general %s105, 384, %s108, %s109, [#allocation10], [#allocation11], %s119, 0
    %s129 = sadd.s32 %s25, 3
    %s130 = sld [smem:[#allocation4 + %s129]]
    %s131 = sld [smem:[#allocation5 + %s129]]
    %s132 = sshra.s32 %s131, 7
    %s133 = sand.u32 %s131, 127
    %s134 = sshra.s32 %s130, 3
    %s135 = sand.u32 %s130, 7
    %s136 = smul.u32 %s134, 2
    %s137 = sadd.s32 %s132, %s136
    %s138 = sadd.s32 %s137, %s34
    %s139 = smul.addr %s138, 128
    %s140 = scalar_lea.hbm %s2, %s139
    %s141 = sadd.s32 3, %s34
    %s142 = smul.addr %s141, 128
    %s143 = scalar_lea.hbm %s3, %s142
    %s144 = scalar_lea.sflag [#allocation2], 3
    %s146 = sshll.u32 1, 14
    %s147 = sxor.u32 4294967295, %s146
    %s150 = sshll.u32 3, 24
    %s151 = sxor.u32 4294967295, %s150
    %s152 = sand.u32 0, %s151
    %s154 = sor.u32 %s152, 0
    %157 = sst [smem:[#allocation13]] 512
    %s158 = scalar_lea.smem [#allocation13], 1
    %159 = sst [smem:[%s158]] 512
    %s160 = scalar_lea.smem [#allocation13], 2
    %161 = sst [smem:[%s160]] 8
    %163 = dma.general %s140, 384, %s143, %s144, [#allocation12], [#allocation13], %s154, 0
    %s164 = smul.u32 8, 1
    %s165 = smul.u32 %s164, 3
    %s166 = smul.u32 %s165, 1
    %s167 = smul.u32 %s166, 1
    %s168 = sshll.u32 %s167, 4
    %169 = dma.done [#allocation2], %s168
    %s170 = sshll.u32 %s167, 4
    %171 = dma.done %s74, %s170
    %s172 = sshll.u32 %s167, 4
    %173 = dma.done %s109, %s172
    %s174 = sshll.u32 %s167, 4
    %175 = dma.done %s144, %s174
  $region6: #{random_grid_shuffle.1} parent=0 // loop_footer
    %s23 = sadd.s32 1, %s19
  $region7: #{random_grid_shuffle.1} parent=0 // loop_footer_branch
    %18 = sbr.rel target = $region3
  $region8: #{random_grid_shuffle.1} parent=0 // loop_exit
    _
  %176 = vsyncmov [#allocation2]
  %s177 = vpop.sfrf %176
  %p178 = scmp.eq.s32.totalorder %s177, 0
  %p179 = pneg %p178
  %181 = shalt.err (%p179)
  %s182 = scalar_lea.sflag [#allocation2], 1
  %183 = vsyncmov %s182
  %s184 = vpop.sfrf %183
  %p185 = scmp.eq.s32.totalorder %s184, 0
  %p186 = pneg %p185
  %188 = shalt.err (%p186)
  %s189 = scalar_lea.sflag [#allocation2], 2
  %190 = vsyncmov %s189
  %s191 = vpop.sfrf %190
  %p192 = scmp.eq.s32.totalorder %s191, 0
  %p193 = pneg %p192
  %195 = shalt.err (%p193)
  %s196 = scalar_lea.sflag [#allocation2], 3
  %197 = vsyncmov %s196
  %s198 = vpop.sfrf %197
  %p199 = scmp.eq.s32.totalorder %s198, 0
  %p200 = pneg %p199
  %202 = shalt.err (%p200)

</llo_original>
